<compile_context>
chip_gen: v7x
topology: tpu7x:2x2x1
jax: 0.10.0
libtpu: 0.0.40
codegen_flags: <defaults>
</compile_context>

<pallas_src>
import functools

import jax
import jax.numpy as jnp
from jax.experimental import pallas as pl
from jax.experimental.pallas import tpu as pltpu

PRIMITIVES = ("none", "skip_connect", "avg_pool_3x3", "max_pool_3x3", "conv_3x3")

_NEG = -1.0e30  # finite "minus infinity" sentinel (never -inf -> no inf*0 NaNs)


def _round_up(v, m):
    return (v + m - 1) // m * m


def _mixed_op_kernel(w_ref, xg_ref, neg_ref, sinv_ref, cw_ref, o_ref, *, wp, guard):
    # One image per grid step.
    # w_ref    : SMEM (num_ops,)   f32   mixing weights (only w[1], w[3] read;
    #                                    w[2] folded into sinv, w[4] into cw)
    # xg_ref   : VMEM (Cp, Lg)     f32   guard-banded, zero-padded flat image
    # neg_ref  : VMEM (1, Lg)      f32   additive max mask: 0 interior, -1e30 pad
    # sinv_ref : VMEM (1, Lout)    f32   w[avg] / valid-neighbour count (0 at pad)
    # cw_ref   : VMEM (Cp, 9*Cp)   bf16  conv weight, w[conv] folded, tap-major K
    # o_ref    : VMEM (Cp, Lout)   f32   mixed output (flat padded layout)
    cp = o_ref.shape[0]
    l_out = o_ref.shape[1]

    pool_sum = jnp.zeros((cp, l_out), jnp.float32)
    mx = jnp.full((cp, l_out), _NEG, jnp.float32)
    taps = []  # ReLU'd tap windows kept as values (no VMEM scratch at this size)

    # 3x3 taps: each tap is a static lane-offset window into the guard-banded
    # flat buffer (+/-1 row/col shifts become lane shifts of +/-(W+2) / +/-1).
    for dh in range(3):
        for dw in range(3):
            off = guard + (dh - 1) * wp + (dw - 1)
            xs = xg_ref[:, off:off + l_out]           # (Cp, Lout) shifted window
            ns = neg_ref[:, off:off + l_out]          # (1, Lout) additive mask
            pool_sum = pool_sum + xs                  # zero padding -> valid sum
            mx = jnp.maximum(mx, xs + ns)             # masked max, 1 add per tap
            taps.append(jnp.maximum(xs, 0.0))         # ReLU tap (f32, tile-aligned)

    # im2col as a value: (8,128)-tile-aligned f32 concat, one cast to bf16, then
    # a single MXU matmul (Cp, 9Cp) @ (9Cp, Lout) with f32 accumulation.
    r = jnp.concatenate(taps, axis=0).astype(jnp.bfloat16)
    conv = jnp.dot(cw_ref[...], r, preferred_element_type=jnp.float32)

    x_c = xg_ref[:, guard:guard + l_out]              # center tap == identity input

    # 'none' contributes w[0] * 0 == 0, so it is skipped.  Pad / tail lanes hold
    # finite garbage (sentinel is -1e30, not -inf); the wrapper crop discards them.
    o_ref[...] = (w_ref[1] * x_c                      # skip_connect
                  + pool_sum * sinv_ref[...]          # avg_pool (w[2] in sinv)
                  + w_ref[3] * mx                     # max_pool
                  + conv                              # conv_3x3 (w[4] in cw)
                  ).astype(o_ref.dtype)


@jax.jit
def mixed_op(x_nchw, weights, conv_w):
    """x_nchw: (N, C, H, W) f32; weights: (num_ops,) f32; conv_w: (3,3,C,C) f32."""
    x = x_nchw.astype(jnp.float32)
    n, c, h, w = x.shape
    cp = _round_up(c, 8)                    # sublane-aligned channel count
    hp, wp = h + 2, w + 2
    lp = hp * wp                            # flat zero-padded spatial size / image
    l_out = _round_up(lp, 128)              # lane-dense width (multiple of 128)
    guard = wp + 1                          # covers the worst-case +/-(wp+1) tap shift
    lg = l_out + 2 * guard

    # Per-image channel-major layout: only zero pads, no N<->C transpose.
    xpad = jnp.pad(x, ((0, 0), (0, cp - c), (1, 1), (1, 1)))        # (N, Cp, Hp, Wp)
    xg = jnp.pad(xpad.reshape(n, cp, lp),
                 ((0, 0), (0, 0), (guard, lg - lp - guard)))        # (N, Cp, Lg)

    # Interior mask (1 at real pixels) in the flat padded layout; image-invariant.
    interior2d = jnp.pad(jnp.ones((h, w), jnp.float32), ((1, 1), (1, 1)))  # (Hp, Wp)
    ivec = interior2d.reshape(1, lp)

    # Additive max-pool mask in the guarded layout (finite sentinel).
    neg_core = jnp.where(ivec > 0.0, 0.0, _NEG)
    neg = jnp.pad(neg_core, ((0, 0), (guard, lg - lp - guard)),
                  constant_values=_NEG)                             # (1, Lg)

    # Avg-pool denominator (count_include_pad=False) with w[avg] folded in.
    mm = jnp.pad(interior2d, ((1, 1), (1, 1)))
    cnt2d = sum(mm[dh:dh + hp, dw:dw + wp]
                for dh in range(3) for dw in range(3))              # (Hp, Wp)
    sinv2d = jnp.where(interior2d > 0.0, 1.0 / jnp.maximum(cnt2d, 1.0), 0.0)
    sinv = jnp.pad(weights[2] * sinv2d.reshape(1, lp),
                   ((0, 0), (0, l_out - lp)))                       # (1, Lout)

    # Conv weight -> (Cp, 9*Cp): channel-padded (zero rows/cols are inert in the
    # matmul), w[conv] folded, tap-major K, bf16 for the MXU.
    wfull = jnp.zeros((3, 3, cp, cp), jnp.float32)
    wfull = wfull.at[:, :, :c, :c].set(conv_w.astype(jnp.float32))
    wmat = (weights[4]
            * jnp.transpose(wfull, (3, 0, 1, 2)).reshape(cp, 9 * cp)
            ).astype(jnp.bfloat16)

    kernel = functools.partial(_mixed_op_kernel, wp=wp, guard=guard)

    flops = int(n * (2 * cp * (9 * cp) * l_out + 4 * 9 * cp * l_out))
    bytes_accessed = int((xg.size + n * cp * l_out + neg.size + sinv.size) * 4
                         + wmat.size * 2)

    out = pl.pallas_call(
        kernel,
        out_shape=jax.ShapeDtypeStruct((n, cp, l_out), jnp.float32),
        grid=(n,),
        in_specs=[
            pl.BlockSpec(memory_space=pltpu.MemorySpace.SMEM),        # mixing weights
            pl.BlockSpec((None, cp, lg), lambda i: (i, 0, 0)),        # per-image input
            pl.BlockSpec((1, lg), lambda i: (0, 0)),                  # additive max mask
            pl.BlockSpec((1, l_out), lambda i: (0, 0)),               # w[avg] / count
            pl.BlockSpec((cp, 9 * cp), lambda i: (0, 0)),             # folded conv weight
        ],
        out_specs=pl.BlockSpec((None, cp, l_out), lambda i: (i, 0, 0)),
        compiler_params=pltpu.CompilerParams(
            dimension_semantics=("parallel",)),                       # v7x: split N over TCs
        cost_estimate=pl.CostEstimate(flops=flops, transcendentals=0,
                                      bytes_accessed=bytes_accessed),
    )(weights.astype(jnp.float32), xg, neg, sinv, wmat)

    # Crop padded channels / spatial halo; layout is already per-image -> no transpose.
    out = out[:, :c, :lp].reshape(n, c, hp, wp)[:, :, 1:h + 1, 1:w + 1]
    return out


def _reference_mixed_op(x_nchw, weights, conv_w):
    """Pure-JAX reference with identical semantics (for verification)."""
    x = jnp.transpose(x_nchw, (0, 2, 3, 1)).astype(jnp.float32)
    n, h, w, c = x.shape
    xp = jnp.pad(x, ((0, 0), (1, 1), (1, 1), (0, 0)))
    mask = jnp.pad(jnp.ones((1, h, w, 1), jnp.float32), ((0, 0), (1, 1), (1, 1), (0, 0)))
    xm = jnp.where(mask > 0.0, xp, -jnp.inf)
    relu = jnp.maximum(xp, 0.0)

    pool_sum = jnp.zeros((n, h, w, c), jnp.float32)
    cnt = jnp.zeros((1, h, w, 1), jnp.float32)
    mx = jnp.full((n, h, w, c), -jnp.inf, jnp.float32)
    conv = jnp.zeros((n, h, w, c), jnp.float32)
    for dh in range(3):
        for dw in range(3):
            pool_sum += xp[:, dh:dh + h, dw:dw + w, :]
            cnt += mask[:, dh:dh + h, dw:dw + w, :]
            mx = jnp.maximum(mx, xm[:, dh:dh + h, dw:dw + w, :])
            conv += jnp.einsum("nhwc,cd->nhwd",
                               relu[:, dh:dh + h, dw:dw + w, :], conv_w[dh, dw])
    avg = pool_sum / cnt
    out = weights[1] * x + weights[2] * avg + weights[3] * mx + weights[4] * conv
    return jnp.transpose(out, (0, 3, 1, 2))


if __name__ == "__main__":
    key = jax.random.PRNGKey(0)
    k_x, k_w, k_cw = jax.random.split(key, 3)

    N, C, H, W = 2, 4, 16, 16
    x = jax.random.normal(k_x, (N, C, H, W), jnp.float32)
    # Architecture mixing weights (as would come from softmax over alphas).
    weights = jax.nn.softmax(jax.random.normal(k_w, (len(PRIMITIVES),), jnp.float32))
    # Deterministic conv_3x3 parameter, stored (kh, kw, cin, cout).
    conv_w = 0.1 * jax.random.normal(k_cw, (3, 3, C, C), jnp.float32)

    y = mixed_op(x, weights, conv_w)
    y = jax.block_until_ready(y)

    y_ref = _reference_mixed_op(x, weights, conv_w)
    assert y.shape == (N, C, H, W)
    # Tolerance loosened vs the pure-f32 reference because the conv path runs in
    # bf16 (f32 accumulation) on the MXU.
    assert jnp.allclose(y, y_ref, atol=2e-2, rtol=2e-2), "mismatch vs reference"

    print("KERNEL_OK")
</pallas_src>

<mosaic_0001>
module attributes {stable_mosaic.version = 11 : i64} {
  func.func @_mixed_op_kernel(%arg0: i32, %arg1: memref<5xf32, #tpu.memory_space<smem>>, %arg2: memref<1x8x422xf32, #tpu.memory_space<vmem>>, %arg3: memref<1x422xf32, #tpu.memory_space<vmem>>, %arg4: memref<1x384xf32, #tpu.memory_space<vmem>>, %arg5: memref<8x72xbf16, #tpu.memory_space<vmem>>, %arg6: memref<1x8x384xf32, #tpu.memory_space<vmem>>) attributes {dimension_semantics = [#tpu.dimension_semantics<parallel>], iteration_bounds = array<i64: 2>, scalar_prefetch = 0 : i64, scratch_operands = 0 : i64, tpu.core_type = #tpu.core_type<tc>, window_params = [{transform_indices = @transform_0, window_bounds = array<i64: 5>}, {transform_indices = @transform_1, window_bounds = array<i64: 1, 8, 422>}, {pipeline_mode = #tpu.pipeline_mode<synchronous>, transform_indices = @transform_2, window_bounds = array<i64: 1, 422>}, {pipeline_mode = #tpu.pipeline_mode<synchronous>, transform_indices = @transform_3, window_bounds = array<i64: 1, 384>}, {pipeline_mode = #tpu.pipeline_mode<synchronous>, transform_indices = @transform_4, window_bounds = array<i64: 8, 72>}, {transform_indices = @transform_5, window_bounds = array<i64: 1, 8, 384>}]} {
    %cst = arith.constant 0.000000e+00 : f32
    %0 = vector.broadcast %cst : f32 to vector<8x384xf32>
    %cst_0 = arith.constant -1.000000e+30 : f32
    %1 = vector.broadcast %cst_0 : f32 to vector<8x384xf32>
    %c0 = arith.constant 0 : index
    %c0_1 = arith.constant 0 : index
    %c0_2 = arith.constant 0 : index
    %2 = vector.load %arg2[%c0, %c0_1, %c0_2] : memref<1x8x422xf32, #tpu.memory_space<vmem>>, vector<1x8x384xf32>
    %3 = vector.shape_cast %2 : vector<1x8x384xf32> to vector<8x384xf32>
    %c0_3 = arith.constant 0 : index
    %c0_4 = arith.constant 0 : index
    %4 = vector.load %arg3[%c0_3, %c0_4] : memref<1x422xf32, #tpu.memory_space<vmem>>, vector<1x384xf32>
    %5 = vector.shape_cast %4 : vector<1x384xf32> to vector<1x384xf32>
    %6 = arith.addf %0, %3 : vector<8x384xf32>
    %7 = vector.broadcast %5 : vector<1x384xf32> to vector<8x384xf32>
    %8 = arith.addf %3, %7 : vector<8x384xf32>
    %9 = arith.maximumf %1, %8 : vector<8x384xf32>
    %cst_5 = arith.constant 0.000000e+00 : f32
    %10 = vector.broadcast %cst_5 : f32 to vector<8x384xf32>
    %11 = arith.maximumf %3, %10 : vector<8x384xf32>
    %c0_6 = arith.constant 0 : index
    %c0_7 = arith.constant 0 : index
    %c1 = arith.constant 1 : index
    %12 = vector.load %arg2[%c0_6, %c0_7, %c1] : memref<1x8x422xf32, #tpu.memory_space<vmem>>, vector<1x8x384xf32>
    %13 = vector.shape_cast %12 : vector<1x8x384xf32> to vector<8x384xf32>
    %c0_8 = arith.constant 0 : index
    %c1_9 = arith.constant 1 : index
    %14 = vector.load %arg3[%c0_8, %c1_9] : memref<1x422xf32, #tpu.memory_space<vmem>>, vector<1x384xf32>
    %15 = vector.shape_cast %14 : vector<1x384xf32> to vector<1x384xf32>
    %16 = arith.addf %6, %13 : vector<8x384xf32>
    %17 = vector.broadcast %15 : vector<1x384xf32> to vector<8x384xf32>
    %18 = arith.addf %13, %17 : vector<8x384xf32>
    %19 = arith.maximumf %9, %18 : vector<8x384xf32>
    %cst_10 = arith.constant 0.000000e+00 : f32
    %20 = vector.broadcast %cst_10 : f32 to vector<8x384xf32>
    %21 = arith.maximumf %13, %20 : vector<8x384xf32>
    %c0_11 = arith.constant 0 : index
    %c0_12 = arith.constant 0 : index
    %c2 = arith.constant 2 : index
    %22 = vector.load %arg2[%c0_11, %c0_12, %c2] : memref<1x8x422xf32, #tpu.memory_space<vmem>>, vector<1x8x384xf32>
    %23 = vector.shape_cast %22 : vector<1x8x384xf32> to vector<8x384xf32>
    %c0_13 = arith.constant 0 : index
    %c2_14 = arith.constant 2 : index
    %24 = vector.load %arg3[%c0_13, %c2_14] : memref<1x422xf32, #tpu.memory_space<vmem>>, vector<1x384xf32>
    %25 = vector.shape_cast %24 : vector<1x384xf32> to vector<1x384xf32>
    %26 = arith.addf %16, %23 : vector<8x384xf32>
    %27 = vector.broadcast %25 : vector<1x384xf32> to vector<8x384xf32>
    %28 = arith.addf %23, %27 : vector<8x384xf32>
    %29 = arith.maximumf %19, %28 : vector<8x384xf32>
    %cst_15 = arith.constant 0.000000e+00 : f32
    %30 = vector.broadcast %cst_15 : f32 to vector<8x384xf32>
    %31 = arith.maximumf %23, %30 : vector<8x384xf32>
    %c0_16 = arith.constant 0 : index
    %c0_17 = arith.constant 0 : index
    %c18 = arith.constant 18 : index
    %32 = vector.load %arg2[%c0_16, %c0_17, %c18] : memref<1x8x422xf32, #tpu.memory_space<vmem>>, vector<1x8x384xf32>
    %33 = vector.shape_cast %32 : vector<1x8x384xf32> to vector<8x384xf32>
    %c0_18 = arith.constant 0 : index
    %c18_19 = arith.constant 18 : index
    %34 = vector.load %arg3[%c0_18, %c18_19] : memref<1x422xf32, #tpu.memory_space<vmem>>, vector<1x384xf32>
    %35 = vector.shape_cast %34 : vector<1x384xf32> to vector<1x384xf32>
    %36 = arith.addf %26, %33 : vector<8x384xf32>
    %37 = vector.broadcast %35 : vector<1x384xf32> to vector<8x384xf32>
    %38 = arith.addf %33, %37 : vector<8x384xf32>
    %39 = arith.maximumf %29, %38 : vector<8x384xf32>
    %cst_20 = arith.constant 0.000000e+00 : f32
    %40 = vector.broadcast %cst_20 : f32 to vector<8x384xf32>
    %41 = arith.maximumf %33, %40 : vector<8x384xf32>
    %c0_21 = arith.constant 0 : index
    %c0_22 = arith.constant 0 : index
    %c19 = arith.constant 19 : index
    %42 = vector.load %arg2[%c0_21, %c0_22, %c19] : memref<1x8x422xf32, #tpu.memory_space<vmem>>, vector<1x8x384xf32>
    %43 = vector.shape_cast %42 : vector<1x8x384xf32> to vector<8x384xf32>
    %c0_23 = arith.constant 0 : index
    %c19_24 = arith.constant 19 : index
    %44 = vector.load %arg3[%c0_23, %c19_24] : memref<1x422xf32, #tpu.memory_space<vmem>>, vector<1x384xf32>
    %45 = vector.shape_cast %44 : vector<1x384xf32> to vector<1x384xf32>
    %46 = arith.addf %36, %43 : vector<8x384xf32>
    %47 = vector.broadcast %45 : vector<1x384xf32> to vector<8x384xf32>
    %48 = arith.addf %43, %47 : vector<8x384xf32>
    %49 = arith.maximumf %39, %48 : vector<8x384xf32>
    %cst_25 = arith.constant 0.000000e+00 : f32
    %50 = vector.broadcast %cst_25 : f32 to vector<8x384xf32>
    %51 = arith.maximumf %43, %50 : vector<8x384xf32>
    %c0_26 = arith.constant 0 : index
    %c0_27 = arith.constant 0 : index
    %c20 = arith.constant 20 : index
    %52 = vector.load %arg2[%c0_26, %c0_27, %c20] : memref<1x8x422xf32, #tpu.memory_space<vmem>>, vector<1x8x384xf32>
    %53 = vector.shape_cast %52 : vector<1x8x384xf32> to vector<8x384xf32>
    %c0_28 = arith.constant 0 : index
    %c20_29 = arith.constant 20 : index
    %54 = vector.load %arg3[%c0_28, %c20_29] : memref<1x422xf32, #tpu.memory_space<vmem>>, vector<1x384xf32>
    %55 = vector.shape_cast %54 : vector<1x384xf32> to vector<1x384xf32>
    %56 = arith.addf %46, %53 : vector<8x384xf32>
    %57 = vector.broadcast %55 : vector<1x384xf32> to vector<8x384xf32>
    %58 = arith.addf %53, %57 : vector<8x384xf32>
    %59 = arith.maximumf %49, %58 : vector<8x384xf32>
    %cst_30 = arith.constant 0.000000e+00 : f32
    %60 = vector.broadcast %cst_30 : f32 to vector<8x384xf32>
    %61 = arith.maximumf %53, %60 : vector<8x384xf32>
    %c0_31 = arith.constant 0 : index
    %c0_32 = arith.constant 0 : index
    %c36 = arith.constant 36 : index
    %62 = vector.load %arg2[%c0_31, %c0_32, %c36] : memref<1x8x422xf32, #tpu.memory_space<vmem>>, vector<1x8x384xf32>
    %63 = vector.shape_cast %62 : vector<1x8x384xf32> to vector<8x384xf32>
    %c0_33 = arith.constant 0 : index
    %c36_34 = arith.constant 36 : index
    %64 = vector.load %arg3[%c0_33, %c36_34] : memref<1x422xf32, #tpu.memory_space<vmem>>, vector<1x384xf32>
    %65 = vector.shape_cast %64 : vector<1x384xf32> to vector<1x384xf32>
    %66 = arith.addf %56, %63 : vector<8x384xf32>
    %67 = vector.broadcast %65 : vector<1x384xf32> to vector<8x384xf32>
    %68 = arith.addf %63, %67 : vector<8x384xf32>
    %69 = arith.maximumf %59, %68 : vector<8x384xf32>
    %cst_35 = arith.constant 0.000000e+00 : f32
    %70 = vector.broadcast %cst_35 : f32 to vector<8x384xf32>
    %71 = arith.maximumf %63, %70 : vector<8x384xf32>
    %c0_36 = arith.constant 0 : index
    %c0_37 = arith.constant 0 : index
    %c37 = arith.constant 37 : index
    %72 = vector.load %arg2[%c0_36, %c0_37, %c37] : memref<1x8x422xf32, #tpu.memory_space<vmem>>, vector<1x8x384xf32>
    %73 = vector.shape_cast %72 : vector<1x8x384xf32> to vector<8x384xf32>
    %c0_38 = arith.constant 0 : index
    %c37_39 = arith.constant 37 : index
    %74 = vector.load %arg3[%c0_38, %c37_39] : memref<1x422xf32, #tpu.memory_space<vmem>>, vector<1x384xf32>
    %75 = vector.shape_cast %74 : vector<1x384xf32> to vector<1x384xf32>
    %76 = arith.addf %66, %73 : vector<8x384xf32>
    %77 = vector.broadcast %75 : vector<1x384xf32> to vector<8x384xf32>
    %78 = arith.addf %73, %77 : vector<8x384xf32>
    %79 = arith.maximumf %69, %78 : vector<8x384xf32>
    %cst_40 = arith.constant 0.000000e+00 : f32
    %80 = vector.broadcast %cst_40 : f32 to vector<8x384xf32>
    %81 = arith.maximumf %73, %80 : vector<8x384xf32>
    %c0_41 = arith.constant 0 : index
    %c0_42 = arith.constant 0 : index
    %c38 = arith.constant 38 : index
    %82 = vector.load %arg2[%c0_41, %c0_42, %c38] : memref<1x8x422xf32, #tpu.memory_space<vmem>>, vector<1x8x384xf32>
    %83 = vector.shape_cast %82 : vector<1x8x384xf32> to vector<8x384xf32>
    %c0_43 = arith.constant 0 : index
    %c38_44 = arith.constant 38 : index
    %84 = vector.load %arg3[%c0_43, %c38_44] : memref<1x422xf32, #tpu.memory_space<vmem>>, vector<1x384xf32>
    %85 = vector.shape_cast %84 : vector<1x384xf32> to vector<1x384xf32>
    %86 = arith.addf %76, %83 : vector<8x384xf32>
    %87 = vector.broadcast %85 : vector<1x384xf32> to vector<8x384xf32>
    %88 = arith.addf %83, %87 : vector<8x384xf32>
    %89 = arith.maximumf %79, %88 : vector<8x384xf32>
    %cst_45 = arith.constant 0.000000e+00 : f32
    %90 = vector.broadcast %cst_45 : f32 to vector<8x384xf32>
    %91 = arith.maximumf %83, %90 : vector<8x384xf32>
    %92 = tpu.concatenate %11, %21, %31, %41, %51, %61, %71, %81, %91 in 0 : vector<8x384xf32>, vector<8x384xf32>, vector<8x384xf32>, vector<8x384xf32>, vector<8x384xf32>, vector<8x384xf32>, vector<8x384xf32>, vector<8x384xf32>, vector<8x384xf32> -> vector<72x384xf32>
    %93 = arith.truncf %92 : vector<72x384xf32> to vector<72x384xbf16>
    %c0_46 = arith.constant 0 : index
    %c0_47 = arith.constant 0 : index
    %94 = vector.load %arg5[%c0_46, %c0_47] : memref<8x72xbf16, #tpu.memory_space<vmem>>, vector<8x72xbf16>
    %cst_48 = arith.constant dense<0.000000e+00> : vector<8x384xf32>
    %95 = tpu.matmul %94, %93, %cst_48 {dimension_numbers = #tpu.dot_dimension_numbers<[1], [0], [0], [1], [0, 0, 1, 1], [], []>} : vector<8x72xbf16>, vector<72x384xbf16>, vector<8x384xf32> -> vector<8x384xf32>
    %c0_49 = arith.constant 0 : index
    %c0_50 = arith.constant 0 : index
    %c19_51 = arith.constant 19 : index
    %96 = vector.load %arg2[%c0_49, %c0_50, %c19_51] : memref<1x8x422xf32, #tpu.memory_space<vmem>>, vector<1x8x384xf32>
    %97 = vector.shape_cast %96 : vector<1x8x384xf32> to vector<8x384xf32>
    %c1_52 = arith.constant 1 : index
    %98 = memref.load %arg1[%c1_52] : memref<5xf32, #tpu.memory_space<smem>>
    %99 = vector.broadcast %98 : f32 to vector<8x384xf32>
    %100 = arith.mulf %99, %97 : vector<8x384xf32>
    %c0_53 = arith.constant 0 : index
    %c0_54 = arith.constant 0 : index
    %101 = vector.load %arg4[%c0_53, %c0_54] : memref<1x384xf32, #tpu.memory_space<vmem>>, vector<1x384xf32>
    %102 = vector.broadcast %101 : vector<1x384xf32> to vector<8x384xf32>
    %103 = arith.mulf %86, %102 : vector<8x384xf32>
    %104 = arith.addf %100, %103 : vector<8x384xf32>
    %c3 = arith.constant 3 : index
    %105 = memref.load %arg1[%c3] : memref<5xf32, #tpu.memory_space<smem>>
    %106 = vector.broadcast %105 : f32 to vector<8x384xf32>
    %107 = arith.mulf %106, %89 : vector<8x384xf32>
    %108 = arith.addf %104, %107 : vector<8x384xf32>
    %109 = arith.addf %108, %95 : vector<8x384xf32>
    %c0_55 = arith.constant 0 : index
    %c0_56 = arith.constant 0 : index
    %c0_57 = arith.constant 0 : index
    %110 = vector.load %arg6[%c0_55, %c0_56, %c0_57] : memref<1x8x384xf32, #tpu.memory_space<vmem>>, vector<1x8x384xf32>
    %111 = vector.shape_cast %110 : vector<1x8x384xf32> to vector<8x384xf32>
    %112 = vector.shape_cast %109 : vector<8x384xf32> to vector<1x8x384xf32>
    tpu.vector_store %arg6[%c0_55, %c0_56, %c0_57], %112 {strides = array<i32>} : memref<1x8x384xf32, #tpu.memory_space<vmem>>, vector<1x8x384xf32>,
    return
  }
  func.func @transform_0(%arg0: i32) -> i32 {
    %c0_i32 = arith.constant 0 : i32
    %c0_i32_0 = arith.constant 0 : i32
    return %c0_i32 : i32
  }
  func.func @transform_1(%arg0: i32) -> (i32, i32, i32) {
    %c0_i32 = arith.constant 0 : i32
    %c0_i32_0 = arith.constant 0 : i32
    %c0_i32_1 = arith.constant 0 : i32
    return %arg0, %c0_i32, %c0_i32_0 : i32, i32, i32
  }
  func.func @transform_2(%arg0: i32) -> (i32, i32) {
    %c0_i32 = arith.constant 0 : i32
    %c0_i32_0 = arith.constant 0 : i32
    %c0_i32_1 = arith.constant 0 : i32
    return %c0_i32, %c0_i32_0 : i32, i32
  }
  func.func @transform_3(%arg0: i32) -> (i32, i32) {
    %c0_i32 = arith.constant 0 : i32
    %c0_i32_0 = arith.constant 0 : i32
    %c0_i32_1 = arith.constant 0 : i32
    return %c0_i32, %c0_i32_0 : i32, i32
  }
  func.func @transform_4(%arg0: i32) -> (i32, i32) {
    %c0_i32 = arith.constant 0 : i32
    %c0_i32_0 = arith.constant 0 : i32
    %c0_i32_1 = arith.constant 0 : i32
    return %c0_i32, %c0_i32_0 : i32, i32
  }
  func.func @transform_5(%arg0: i32) -> (i32, i32, i32) {
    %c0_i32 = arith.constant 0 : i32
    %c0_i32_0 = arith.constant 0 : i32
    %c0_i32_1 = arith.constant 0 : i32
    return %arg0, %c0_i32, %c0_i32_0 : i32, i32, i32
  }
}

</mosaic_0001>

<llo_original>
// kernel: mixed_op.1
$region0: #{mixed_op.1}
  #allocation0 [shape = 'u32[]', space=smem, size = 0x4, offset = 0x4, fixed_abs, tag = 'smem constant byte address 0x4 - core index']
  #allocation1 [shape = 'u32[144,128]{1,0:T(1,128)}', space=vmem, size = 0x12000, scoped, tag = 'internal scratch']
  %s0 = inlined_call_operand.vmem [shape: f32[5], index: 0, kind: input, shape index: {}]
  %s1 = inlined_call_operand.vmem [shape: f32[2,8,422], index: 1, kind: input, shape index: {}]
  %s2 = inlined_call_operand.vmem [shape: f32[1,422], index: 2, kind: input, shape index: {}]
  %s3 = inlined_call_operand.vmem [shape: f32[1,384], index: 3, kind: input, shape index: {}]
  %s4 = inlined_call_operand.vmem [shape: bf16[8,72], index: 4, kind: input, shape index: {}]
  %s5 = inlined_call_operand.vmem [shape: f32[2,8,384], index: 5, kind: output, shape index: {}]
  %s6 = sld [smem:[#allocation0]]
  $region57: #{mixed_op.1} parent=0
    _
  %s8 = ssub.s32 1, %s6
  %s9 = scalar_select 0, %s8, %s6
  $region1: #{mixed_op.1} parent=0
    #allocation2 [shape = 'u8[512]{0}', space=smem, size = 0x200, scoped, tag = 'input window, operand 0, single buffered']
    #allocation3 [shape = 's32[2]{0}', space=sflag, size = 0x8, scoped, tag = 'scoped memory for mixed_op.1']
    %10 = vsyncpa [#allocation3], 0
    loop: start=0, step=1, limit=4
    $region2: #{mixed_op.1} parent=1 // loop_pre_header
      _
    $region3: #{mixed_op.1} parent=1 // loop_header
      %s12 = sphi 0, %s16
      %p13 = scmp.ge.s32.totalorder %s12, 4
      %s20 = sphi 0, %s20
      %s22 = sphi 0, %s20
      %s23 = sphi 0, %s22
      %s37 = sphi 0, %s23
      %s43 = sphi 0, %s45
      %s46 = sphi 0, %s43
      %s47 = sphi 0, %s46
      %s63 = sphi 0, %s47
      %s67 = sphi 0, %s67
      %s69 = sphi 0, %s67
      %s70 = sphi 0, %s69
      %s84 = sphi 0, %s70
      %s88 = sphi 0, %s88
      %s90 = sphi 0, %s88
      %s91 = sphi 0, %s90
      %s105 = sphi 0, %s91
      %s109 = sphi 0, %s109
      %s111 = sphi 0, %s109
      %s112 = sphi 0, %s111
      %s126 = sphi 0, %s112
      %s132 = sphi 0, %s134
      %s135 = sphi 0, %s132
      %s136 = sphi 0, %s135
      %s152 = sphi 0, %s136
    $region4: #{mixed_op.1} parent=1 // loop_header_branch
      %15 = sbr.rel (%p13) target = $region8
    $region5: #{mixed_op.1} parent=1 // loop_body
      %s17 = ssub.s32 %s12, 1
      %s18 = ssub.s32 %s12, 2
      %s19 = sadd.s32 %s12, 1
      %s21 = sadd.s32 %s20, 1
      %p24 = scmp.eq.s32.totalorder %s12, 1
      %p25 = scmp.ne.s32.totalorder %s20, %s22
      %p26 = scmp.eq.s32.totalorder %s12, 0
      %p27 = por %p25, %p26
      %p28 = scmp.ne.s32.totalorder %s20, %s22
      %p29 = scmp.eq.s32.totalorder %s17, 1
      %p30 = por %p28, %p29
      %p31 = scmp.ne.s32.totalorder %s22, %s23
      %p32 = scmp.eq.s32.totalorder %s17, 0
      %p33 = por %p31, %p32
      %p34 = scmp.ne.s32.totalorder %s22, %s23
      %p35 = scmp.eq.s32.totalorder %s18, 1
      %p36 = por %p34, %p35
      %p38 = scmp.ne.s32.totalorder %s23, %s37
      %p39 = scmp.eq.s32.totalorder %s18, 0
      %p40 = por %p38, %p39
      %s41 = ssub.s32 %s12, %s19
      %p42 = scmp.eq.s32.totalorder %s41, 0
      %s44 = sadd.s32 %s43, 1
      %s45 = scalar_select %p42, %s43, %s44
      %p48 = pneg %p42
      %p49 = scmp.eq.s32.totalorder %s12, 1
      %p50 = por %p48, %p49
      %p51 = scmp.ne.s32.totalorder %s43, %s46
      %p52 = scmp.eq.s32.totalorder %s12, 0
      %p53 = por %p51, %p52
      %p54 = scmp.ne.s32.totalorder %s43, %s46
      %p55 = scmp.eq.s32.totalorder %s17, 1
      %p56 = por %p54, %p55
      %p57 = scmp.ne.s32.totalorder %s46, %s47
      %p58 = scmp.eq.s32.totalorder %s17, 0
      %p59 = por %p57, %p58
      %p60 = scmp.ne.s32.totalorder %s46, %s47
      %p61 = scmp.eq.s32.totalorder %s18, 1
      %p62 = por %p60, %p61
      %p64 = scmp.ne.s32.totalorder %s47, %s63
      %p65 = scmp.eq.s32.totalorder %s18, 0
      %p66 = por %p64, %p65
      %s68 = sadd.s32 %s67, 1
      %p71 = scmp.eq.s32.totalorder %s12, 1
      %p72 = scmp.ne.s32.totalorder %s67, %s69
      %p73 = scmp.eq.s32.totalorder %s12, 0
      %p74 = por %p72, %p73
      %p75 = scmp.ne.s32.totalorder %s67, %s69
      %p76 = scmp.eq.s32.totalorder %s17, 1
      %p77 = por %p75, %p76
      %p78 = scmp.ne.s32.totalorder %s69, %s70
      %p79 = scmp.eq.s32.totalorder %s17, 0
      %p80 = por %p78, %p79
      %p81 = scmp.ne.s32.totalorder %s69, %s70
      %p82 = scmp.eq.s32.totalorder %s18, 1
      %p83 = por %p81, %p82
      %p85 = scmp.ne.s32.totalorder %s70, %s84
      %p86 = scmp.eq.s32.totalorder %s18, 0
      %p87 = por %p85, %p86
      %s89 = sadd.s32 %s88, 1
      %p92 = scmp.eq.s32.totalorder %s12, 1
      %p93 = scmp.ne.s32.totalorder %s88, %s90
      %p94 = scmp.eq.s32.totalorder %s12, 0
      %p95 = por %p93, %p94
      %p96 = scmp.ne.s32.totalorder %s88, %s90
      %p97 = scmp.eq.s32.totalorder %s17, 1
      %p98 = por %p96, %p97
      %p99 = scmp.ne.s32.totalorder %s90, %s91
      %p100 = scmp.eq.s32.totalorder %s17, 0
      %p101 = por %p99, %p100
      %p102 = scmp.ne.s32.totalorder %s90, %s91
      %p103 = scmp.eq.s32.totalorder %s18, 1
      %p104 = por %p102, %p103
      %p106 = scmp.ne.s32.totalorder %s91, %s105
      %p107 = scmp.eq.s32.totalorder %s18, 0
      %p108 = por %p106, %p107
      %s110 = sadd.s32 %s109, 1
      %p113 = scmp.eq.s32.totalorder %s12, 1
      %p114 = scmp.ne.s32.totalorder %s109, %s111
      %p115 = scmp.eq.s32.totalorder %s12, 0
      %p116 = por %p114, %p115
      %p117 = scmp.ne.s32.totalorder %s109, %s111
      %p118 = scmp.eq.s32.totalorder %s17, 1
      %p119 = por %p117, %p118
      %p120 = scmp.ne.s32.totalorder %s111, %s112
      %p121 = scmp.eq.s32.totalorder %s17, 0
      %p122 = por %p120, %p121
      %p123 = scmp.ne.s32.totalorder %s111, %s112
      %p124 = scmp.eq.s32.totalorder %s18, 1
      %p125 = por %p123, %p124
      %p127 = scmp.ne.s32.totalorder %s112, %s126
      %p128 = scmp.eq.s32.totalorder %s18, 0
      %p129 = por %p127, %p128
      %s130 = ssub.s32 %s12, %s19
      %p131 = scmp.eq.s32.totalorder %s130, 0
      %s133 = sadd.s32 %s132, 1
      %s134 = scalar_select %p131, %s132, %s133
      %p137 = pneg %p131
      %p138 = scmp.eq.s32.totalorder %s12, 1
      %p139 = por %p137, %p138
      %p140 = scmp.ne.s32.totalorder %s132, %s135
      %p141 = scmp.eq.s32.totalorder %s12, 0
      %p142 = por %p140, %p141
      %p143 = scmp.ne.s32.totalorder %s132, %s135
      %p144 = scmp.eq.s32.totalorder %s17, 1
      %p145 = por %p143, %p144
      %p146 = scmp.ne.s32.totalorder %s135, %s136
      %p147 = scmp.eq.s32.totalorder %s17, 0
      %p148 = por %p146, %p147
      %p149 = scmp.ne.s32.totalorder %s135, %s136
      %p150 = scmp.eq.s32.totalorder %s18, 1
      %p151 = por %p149, %p150
      %p153 = scmp.ne.s32.totalorder %s136, %s152
      %p154 = scmp.eq.s32.totalorder %s18, 0
      %p155 = por %p153, %p154
      %p156 = scmp.le.s32.totalorder 1, %s12
      %p157 = scmp.lt.s32.totalorder %s12, 3
      %p158 = pnand %p156, %p157
      %p159 = pneg %p158
      // Predicated region
      $region9: #{mixed_op.1} parent=5 // pred_check
        _
      $region10: #{mixed_op.1} parent=5 // pred_check_branch
        %161 = sbr.rel (%p158) target = $region12
      $region11: #{mixed_op.1} parent=5 // pred_region
        %s162 = ssub.s32 %s12, 1
        // Predicated region
        $region13: #{mixed_op.1} parent=11 // pred_check
          %p163 = pneg %p33
        $region14: #{mixed_op.1} parent=11 // pred_check_branch
          %165 = sbr.rel (%p163) target = $region16
        $region15: #{mixed_op.1} parent=11 // pred_region
          %s167 = ssub.s32 16, 16
          %168 = vsyncadd [#allocation3], %s167
          %s170 = sshll.u32 %s0, 4
          %s171 = int_to_ptr.vmem [resolvable:$true] %s170
          %173 = dma.vmem_to_smem %s171, 16, [#allocation2], [#allocation3]
        $region16: #{mixed_op.1} parent=11 // pred_fallthru
          _
        // Predicated region
        $region17: #{mixed_op.1} parent=11 // pred_check
          %p174 = pneg %p80
        $region18: #{mixed_op.1} parent=11 // pred_check_branch
          %176 = sbr.rel (%p174) target = $region20
        $region19: #{mixed_op.1} parent=11 // pred_region
          _
        $region20: #{mixed_op.1} parent=11 // pred_fallthru
          _
        // Predicated region
        $region21: #{mixed_op.1} parent=11 // pred_check
          %p177 = pneg %p101
        $region22: #{mixed_op.1} parent=11 // pred_check_branch
          %179 = sbr.rel (%p177) target = $region24
        $region23: #{mixed_op.1} parent=11 // pred_region
          _
        $region24: #{mixed_op.1} parent=11 // pred_fallthru
          _
        // Predicated region
        $region25: #{mixed_op.1} parent=11 // pred_check
          %p180 = pneg %p122
        $region26: #{mixed_op.1} parent=11 // pred_check_branch
          %182 = sbr.rel (%p180) target = $region28
        $region27: #{mixed_op.1} parent=11 // pred_region
          _
        $region28: #{mixed_op.1} parent=11 // pred_fallthru
          _
      $region12: #{mixed_op.1} parent=5 // pred_fallthru
        _
      %p183 = scmp.lt.s32.totalorder %s12, 2
      // Predicated region
      $region29: #{mixed_op.1} parent=5 // pred_check
        %p184 = pneg %p183
      $region30: #{mixed_op.1} parent=5 // pred_check_branch
        %186 = sbr.rel (%p184) target = $region32
      $region31: #{mixed_op.1} parent=5 // pred_region
        // Predicated region
        $region33: #{mixed_op.1} parent=31 // pred_check
          %p187 = pneg %p53
        $region34: #{mixed_op.1} parent=31 // pred_check_branch
          %189 = sbr.rel (%p187) target = $region36
        $region35: #{mixed_op.1} parent=31 // pred_region
          %p190 = scmp.lt.s32.totalorder %s12, 1
          %s191 = scalar_select %p190, %s12, 1
          %s192 = smul.addr %s191, 4
          %s193 = smul.addr %s192, 8
          %s194 = scalar_lea.vmem %s1, %s193
        $region36: #{mixed_op.1} parent=31 // pred_fallthru
          _
      $region32: #{mixed_op.1} parent=5 // pred_fallthru
        _
      %p195 = scmp.le.s32.totalorder 1, %s12
      %p196 = scmp.lt.s32.totalorder %s12, 3
      %p197 = pnand %p195, %p196
      %p198 = pneg %p197
      // Predicated region
      $region37: #{mixed_op.1} parent=5 // pred_check
        _
      $region38: #{mixed_op.1} parent=5 // pred_check_branch
        %200 = sbr.rel (%p197) target = $region40
      $region39: #{mixed_op.1} parent=5 // pred_region
        %s201 = ssub.s32 %s12, 1
        // Predicated region
        $region41: #{mixed_op.1} parent=39 // pred_check
          %p202 = pneg %p33
        $region42: #{mixed_op.1} parent=39 // pred_check_branch
          %204 = sbr.rel (%p202) target = $region44
        $region43: #{mixed_op.1} parent=39 // pred_region
          %205 = dma.done [#allocation3], 16
        $region44: #{mixed_op.1} parent=39 // pred_fallthru
          _
        %206 = sfence
        %p207 = pneg %p33
        %p208 = pneg %p30
        %p209 = scmp.lt.s32.totalorder %s17, 1
        %s210 = scalar_select %p209, %s17, 1
        %s211 = smul.addr %s210, 4
        %s212 = smul.addr %s211, 8
        %s213 = scalar_lea.vmem %s1, %s212
        %p214 = pneg %p59
        %p215 = pneg %p56
        %p216 = pneg %p80
        %p217 = pneg %p77
        %p218 = pneg %p101
        %p219 = pneg %p98
        %p220 = pneg %p122
        %p221 = pneg %p119
        %p222 = pneg %p148
        %p223 = pneg %p145
        %p224 = scmp.lt.s32.totalorder %s17, 1
        %s225 = scalar_select %p224, %s17, 1
        %s226 = smul.addr %s225, 3
        %s227 = smul.addr %s226, 8
        %s228 = scalar_lea.vmem %s5, %s227
        %p229 = scmp.lt.s32.totalorder %s17, 1
        %s230 = scalar_select %p229, %s17, 1
        %s231 = smul.addr %s230, 4
        %s232 = smul.addr %s231, 8
        %s233 = scalar_lea.vmem %s1, %s232
        %p234 = scmp.lt.s32.totalorder %s17, 1
        %s235 = scalar_select %p234, %s17, 1
        %s236 = smul.addr %s235, 3
        %s237 = smul.addr %s236, 8
        %s238 = scalar_lea.vmem %s5, %s237
        %v240 = vld [vmem:[%s233] sm:$0xff]
        %v241 = vld [vmem:[%s233 + $0x8] sm:$0xff]
        %v242 = vld [vmem:[%s233 + $0x10] sm:$0xff]
        %v243 = vld [vmem:[%s2] sm:$0x7]
        %v244 = vadd.f32 %v240, 0.0
        %v245 = vadd.f32 %v241, 0.0
        %v246 = vadd.f32 %v242, 0.0
        %v248 = vlaneseq
        %v249 = vshrl.u32 %v248, 7
        %v250 = vsub.s32 0, %v249
        %v251 = vrot.slane %v243, %v250
        %v252 = vlaneseq
        %v253 = vshrl.u32 %v252, 7
        %v254 = vsub.s32 1, %v253
        %v255 = vrot.slane %v243, %v254
        %v256 = vlaneseq
        %v257 = vshrl.u32 %v256, 7
        %v258 = vsub.s32 2, %v257
        %v259 = vrot.slane %v243, %v258
        %v263 = vadd.f32 %v240, %v251
        %v264 = vadd.f32 %v241, %v255
        %v265 = vadd.f32 %v242, %v259
        %v266 = vmax.f32 %v263, -1e+30
        %v267 = vmax.f32 %v264, -1e+30
        %v268 = vmax.f32 %v265, -1e+30
        %v269 = vmax.f32 %v240, 0.0
        %v270 = vmax.f32 %v241, 0.0
        %v271 = vmax.f32 %v242, 0.0
        %v272 = vld [vmem:[%s233 + $0x18] sm:$0xff]
        %v273 = vld [vmem:[%s2] sm:$0xf]
        %278 = vrot.lane.b32.xlu0 %v240, 127
        %v279 = vpop.permute.xlu0 %278
        %280 = vrot.lane.b32.xlu0 %v241, 127
        %v281 = vpop.permute.xlu0 %280
        %282 = vrot.lane.b32.xlu0 %v242, 127
        %v283 = vpop.permute.xlu0 %282
        %284 = vrot.lane.b32.xlu0 %v272, 127
        %v285 = vpop.permute.xlu0 %284
        %vm286 = vcmask 1039360
        %v287 = vsel %vm286, %v279, %v281
        %v288 = vsel %vm286, %v281, %v283
        %v289 = vsel %vm286, %v283, %v285
        %v293 = vadd.f32 %v244, %v287
        %v294 = vadd.f32 %v245, %v288
        %v295 = vadd.f32 %v246, %v289
        %v297 = vlaneseq
        %v298 = vshrl.u32 %v297, 7
        %v299 = vsub.s32 0, %v298
        %v300 = vrot.slane %v273, %v299
        %v301 = vlaneseq
        %v302 = vshrl.u32 %v301, 7
        %v303 = vsub.s32 1, %v302
        %v304 = vrot.slane %v273, %v303
        %v305 = vlaneseq
        %v306 = vshrl.u32 %v305, 7
        %v307 = vsub.s32 2, %v306
        %v308 = vrot.slane %v273, %v307
        %v309 = vlaneseq
        %v310 = vshrl.u32 %v309, 7
        %v311 = vsub.s32 3, %v310
        %v312 = vrot.slane %v273, %v311
        %v317 = vadd.f32 %v240, %v300
        %v318 = vadd.f32 %v241, %v304
        %v319 = vadd.f32 %v242, %v308
        %v320 = vadd.f32 %v272, %v312
        %325 = vrot.lane.b32.xlu0 %v317, 127
        %v326 = vpop.permute.xlu0 %325
        %327 = vrot.lane.b32.xlu0 %v318, 127
        %v328 = vpop.permute.xlu0 %327
        %329 = vrot.lane.b32.xlu0 %v319, 127
        %v330 = vpop.permute.xlu0 %329
        %331 = vrot.lane.b32.xlu0 %v320, 127
        %v332 = vpop.permute.xlu0 %331
        %v333 = vsel %vm286, %v326, %v328
        %v334 = vsel %vm286, %v328, %v330
        %v335 = vsel %vm286, %v330, %v332
        %v339 = vmax.f32 %v266, %v333
        %v340 = vmax.f32 %v267, %v334
        %v341 = vmax.f32 %v268, %v335
        %v342 = vmax.f32 %v272, 0.0
        %343 = vrot.lane.b32.xlu0 %v240, 126
        %v344 = vpop.permute.xlu0 %343
        %345 = vrot.lane.b32.xlu0 %v241, 126
        %v346 = vpop.permute.xlu0 %345
        %347 = vrot.lane.b32.xlu0 %v242, 126
        %v348 = vpop.permute.xlu0 %347
        %349 = vrot.lane.b32.xlu0 %v272, 126
        %v350 = vpop.permute.xlu0 %349
        %vm351 = vcmask 1031168
        %v352 = vsel %vm351, %v344, %v346
        %v353 = vsel %vm351, %v346, %v348
        %v354 = vsel %vm351, %v348, %v350
        %v358 = vadd.f32 %v293, %v352
        %v359 = vadd.f32 %v294, %v353
        %v360 = vadd.f32 %v295, %v354
        %361 = vrot.lane.b32.xlu0 %v317, 126
        %v362 = vpop.permute.xlu0 %361
        %363 = vrot.lane.b32.xlu0 %v318, 126
        %v364 = vpop.permute.xlu0 %363
        %365 = vrot.lane.b32.xlu0 %v319, 126
        %v366 = vpop.permute.xlu0 %365
        %367 = vrot.lane.b32.xlu0 %v320, 126
        %v368 = vpop.permute.xlu0 %367
        %v369 = vsel %vm351, %v362, %v364
        %v370 = vsel %vm351, %v364, %v366
        %v371 = vsel %vm351, %v366, %v368
        %v375 = vmax.f32 %v339, %v369
        %v376 = vmax.f32 %v340, %v370
        %v377 = vmax.f32 %v341, %v371
        %378 = vrot.lane.b32.xlu0 %v240, 110
        %v379 = vpop.permute.xlu0 %378
        %380 = vrot.lane.b32.xlu0 %v241, 110
        %v381 = vpop.permute.xlu0 %380
        %382 = vrot.lane.b32.xlu0 %v242, 110
        %v383 = vpop.permute.xlu0 %382
        %384 = vrot.lane.b32.xlu0 %v272, 110
        %v385 = vpop.permute.xlu0 %384
        %vm386 = vcmask 900096
        %v387 = vsel %vm386, %v379, %v381
        %v388 = vsel %vm386, %v381, %v383
        %v389 = vsel %vm386, %v383, %v385
        %v393 = vadd.f32 %v358, %v387
        %v394 = vadd.f32 %v359, %v388
        %v395 = vadd.f32 %v360, %v389
        %396 = vrot.lane.b32.xlu0 %v317, 110
        %v397 = vpop.permute.xlu0 %396
        %398 = vrot.lane.b32.xlu0 %v318, 110
        %v399 = vpop.permute.xlu0 %398
        %400 = vrot.lane.b32.xlu0 %v319, 110
        %v401 = vpop.permute.xlu0 %400
        %402 = vrot.lane.b32.xlu0 %v320, 110
        %v403 = vpop.permute.xlu0 %402
        %v404 = vsel %vm386, %v397, %v399
        %v405 = vsel %vm386, %v399, %v401
        %v406 = vsel %vm386, %v401, %v403
        %v410 = vmax.f32 %v375, %v404
        %v411 = vmax.f32 %v376, %v405
        %v412 = vmax.f32 %v377, %v406
        %413 = vrot.lane.b32.xlu0 %v240, 109
        %v414 = vpop.permute.xlu0 %413
        %415 = vrot.lane.b32.xlu0 %v241, 109
        %v416 = vpop.permute.xlu0 %415
        %417 = vrot.lane.b32.xlu0 %v242, 109
        %v418 = vpop.permute.xlu0 %417
        %419 = vrot.lane.b32.xlu0 %v272, 109
        %v420 = vpop.permute.xlu0 %419
        %vm421 = vcmask 891904
        %v422 = vsel %vm421, %v414, %v416
        %v423 = vsel %vm421, %v416, %v418
        %v424 = vsel %vm421, %v418, %v420
        %v428 = vadd.f32 %v393, %v422
        %v429 = vadd.f32 %v394, %v423
        %v430 = vadd.f32 %v395, %v424
        %431 = vrot.lane.b32.xlu0 %v317, 109
        %v432 = vpop.permute.xlu0 %431
        %433 = vrot.lane.b32.xlu0 %v318, 109
        %v434 = vpop.permute.xlu0 %433
        %435 = vrot.lane.b32.xlu0 %v319, 109
        %v436 = vpop.permute.xlu0 %435
        %437 = vrot.lane.b32.xlu0 %v320, 109
        %v438 = vpop.permute.xlu0 %437
        %v439 = vsel %vm421, %v432, %v434
        %v440 = vsel %vm421, %v434, %v436
        %v441 = vsel %vm421, %v436, %v438
        %v445 = vmax.f32 %v410, %v439
        %v446 = vmax.f32 %v411, %v440
        %v447 = vmax.f32 %v412, %v441
        %448 = vrot.lane.b32.xlu0 %v240, 108
        %v449 = vpop.permute.xlu0 %448
        %450 = vrot.lane.b32.xlu0 %v241, 108
        %v451 = vpop.permute.xlu0 %450
        %452 = vrot.lane.b32.xlu0 %v242, 108
        %v453 = vpop.permute.xlu0 %452
        %454 = vrot.lane.b32.xlu0 %v272, 108
        %v455 = vpop.permute.xlu0 %454
        %vm456 = vcmask 883712
        %v457 = vsel %vm456, %v449, %v451
        %v458 = vsel %vm456, %v451, %v453
        %v459 = vsel %vm456, %v453, %v455
        %v463 = vadd.f32 %v428, %v457
        %v464 = vadd.f32 %v429, %v458
        %v465 = vadd.f32 %v430, %v459
        %466 = vrot.lane.b32.xlu0 %v317, 108
        %v467 = vpop.permute.xlu0 %466
        %468 = vrot.lane.b32.xlu0 %v318, 108
        %v469 = vpop.permute.xlu0 %468
        %470 = vrot.lane.b32.xlu0 %v319, 108
        %v471 = vpop.permute.xlu0 %470
        %472 = vrot.lane.b32.xlu0 %v320, 108
        %v473 = vpop.permute.xlu0 %472
        %v474 = vsel %vm456, %v467, %v469
        %v475 = vsel %vm456, %v469, %v471
        %v476 = vsel %vm456, %v471, %v473
        %v480 = vmax.f32 %v445, %v474
        %v481 = vmax.f32 %v446, %v475
        %v482 = vmax.f32 %v447, %v476
        %483 = vrot.lane.b32.xlu0 %v240, 92
        %v484 = vpop.permute.xlu0 %483
        %485 = vrot.lane.b32.xlu0 %v241, 92
        %v486 = vpop.permute.xlu0 %485
        %487 = vrot.lane.b32.xlu0 %v242, 92
        %v488 = vpop.permute.xlu0 %487
        %489 = vrot.lane.b32.xlu0 %v272, 92
        %v490 = vpop.permute.xlu0 %489
        %vm491 = vcmask 752640
        %v492 = vsel %vm491, %v484, %v486
        %v493 = vsel %vm491, %v486, %v488
        %v494 = vsel %vm491, %v488, %v490
        %v498 = vadd.f32 %v463, %v492
        %v499 = vadd.f32 %v464, %v493
        %v500 = vadd.f32 %v465, %v494
        %501 = vrot.lane.b32.xlu0 %v317, 92
        %v502 = vpop.permute.xlu0 %501
        %503 = vrot.lane.b32.xlu0 %v318, 92
        %v504 = vpop.permute.xlu0 %503
        %505 = vrot.lane.b32.xlu0 %v319, 92
        %v506 = vpop.permute.xlu0 %505
        %507 = vrot.lane.b32.xlu0 %v320, 92
        %v508 = vpop.permute.xlu0 %507
        %v509 = vsel %vm491, %v502, %v504
        %v510 = vsel %vm491, %v504, %v506
        %v511 = vsel %vm491, %v506, %v508
        %v515 = vmax.f32 %v480, %v509
        %v516 = vmax.f32 %v481, %v510
        %v517 = vmax.f32 %v482, %v511
        %518 = vrot.lane.b32.xlu0 %v240, 91
        %v519 = vpop.permute.xlu0 %518
        %520 = vrot.lane.b32.xlu0 %v241, 91
        %v521 = vpop.permute.xlu0 %520
        %522 = vrot.lane.b32.xlu0 %v242, 91
        %v523 = vpop.permute.xlu0 %522
        %524 = vrot.lane.b32.xlu0 %v272, 91
        %v525 = vpop.permute.xlu0 %524
        %vm526 = vcmask 744448
        %v527 = vsel %vm526, %v519, %v521
        %v528 = vsel %vm526, %v521, %v523
        %v529 = vsel %vm526, %v523, %v525
        %v533 = vadd.f32 %v498, %v527
        %v534 = vadd.f32 %v499, %v528
        %v535 = vadd.f32 %v500, %v529
        %536 = vrot.lane.b32.xlu0 %v317, 91
        %v537 = vpop.permute.xlu0 %536
        %538 = vrot.lane.b32.xlu0 %v318, 91
        %v539 = vpop.permute.xlu0 %538
        %540 = vrot.lane.b32.xlu0 %v319, 91
        %v541 = vpop.permute.xlu0 %540
        %542 = vrot.lane.b32.xlu0 %v320, 91
        %v543 = vpop.permute.xlu0 %542
        %v544 = vsel %vm526, %v537, %v539
        %v545 = vsel %vm526, %v539, %v541
        %v546 = vsel %vm526, %v541, %v543
        %v550 = vmax.f32 %v515, %v544
        %v551 = vmax.f32 %v516, %v545
        %v552 = vmax.f32 %v517, %v546
        %553 = vrot.lane.b32.xlu0 %v240, 90
        %v554 = vpop.permute.xlu0 %553
        %555 = vrot.lane.b32.xlu0 %v241, 90
        %v556 = vpop.permute.xlu0 %555
        %557 = vrot.lane.b32.xlu0 %v242, 90
        %v558 = vpop.permute.xlu0 %557
        %559 = vrot.lane.b32.xlu0 %v272, 90
        %v560 = vpop.permute.xlu0 %559
        %vm561 = vcmask 736256
        %v562 = vsel %vm561, %v554, %v556
        %v563 = vsel %vm561, %v556, %v558
        %v564 = vsel %vm561, %v558, %v560
        %v568 = vadd.f32 %v533, %v562
        %v569 = vadd.f32 %v534, %v563
        %v570 = vadd.f32 %v535, %v564
        %571 = vrot.lane.b32.xlu0 %v317, 90
        %v572 = vpop.permute.xlu0 %571
        %573 = vrot.lane.b32.xlu0 %v318, 90
        %v574 = vpop.permute.xlu0 %573
        %575 = vrot.lane.b32.xlu0 %v319, 90
        %v576 = vpop.permute.xlu0 %575
        %577 = vrot.lane.b32.xlu0 %v320, 90
        %v578 = vpop.permute.xlu0 %577
        %v579 = vsel %vm561, %v572, %v574
        %v580 = vsel %vm561, %v574, %v576
        %v581 = vsel %vm561, %v576, %v578
        %v585 = vmax.f32 %v550, %v579
        %v586 = vmax.f32 %v551, %v580
        %v587 = vmax.f32 %v552, %v581
        %592 = vrot.lane.b32.xlu0 %v269, 127
        %v593 = vpop.permute.xlu0 %592
        %594 = vrot.lane.b32.xlu0 %v270, 127
        %v595 = vpop.permute.xlu0 %594
        %596 = vrot.lane.b32.xlu0 %v271, 127
        %v597 = vpop.permute.xlu0 %596
        %598 = vrot.lane.b32.xlu0 %v342, 127
        %v599 = vpop.permute.xlu0 %598
        %v600 = vsel %vm286, %v593, %v595
        %v601 = vsel %vm286, %v595, %v597
        %v602 = vsel %vm286, %v597, %v599
        %606 = vrot.lane.b32.xlu0 %v269, 126
        %v607 = vpop.permute.xlu0 %606
        %608 = vrot.lane.b32.xlu0 %v270, 126
        %v609 = vpop.permute.xlu0 %608
        %610 = vrot.lane.b32.xlu0 %v271, 126
        %v611 = vpop.permute.xlu0 %610
        %612 = vrot.lane.b32.xlu0 %v342, 126
        %v613 = vpop.permute.xlu0 %612
        %v614 = vsel %vm351, %v607, %v609
        %v615 = vsel %vm351, %v609, %v611
        %v616 = vsel %vm351, %v611, %v613
        %620 = vrot.lane.b32.xlu0 %v269, 110
        %v621 = vpop.permute.xlu0 %620
        %622 = vrot.lane.b32.xlu0 %v270, 110
        %v623 = vpop.permute.xlu0 %622
        %624 = vrot.lane.b32.xlu0 %v271, 110
        %v625 = vpop.permute.xlu0 %624
        %626 = vrot.lane.b32.xlu0 %v342, 110
        %v627 = vpop.permute.xlu0 %626
        %v628 = vsel %vm386, %v621, %v623
        %v629 = vsel %vm386, %v623, %v625
        %v630 = vsel %vm386, %v625, %v627
        %634 = vrot.lane.b32.xlu0 %v269, 109
        %v635 = vpop.permute.xlu0 %634
        %636 = vrot.lane.b32.xlu0 %v270, 109
        %v637 = vpop.permute.xlu0 %636
        %638 = vrot.lane.b32.xlu0 %v271, 109
        %v639 = vpop.permute.xlu0 %638
        %640 = vrot.lane.b32.xlu0 %v342, 109
        %v641 = vpop.permute.xlu0 %640
        %v642 = vsel %vm421, %v635, %v637
        %v643 = vsel %vm421, %v637, %v639
        %v644 = vsel %vm421, %v639, %v641
        %648 = vrot.lane.b32.xlu0 %v269, 108
        %v649 = vpop.permute.xlu0 %648
        %650 = vrot.lane.b32.xlu0 %v270, 108
        %v651 = vpop.permute.xlu0 %650
        %652 = vrot.lane.b32.xlu0 %v271, 108
        %v653 = vpop.permute.xlu0 %652
        %654 = vrot.lane.b32.xlu0 %v342, 108
        %v655 = vpop.permute.xlu0 %654
        %v656 = vsel %vm456, %v649, %v651
        %v657 = vsel %vm456, %v651, %v653
        %v658 = vsel %vm456, %v653, %v655
        %662 = vrot.lane.b32.xlu0 %v269, 92
        %v663 = vpop.permute.xlu0 %662
        %664 = vrot.lane.b32.xlu0 %v270, 92
        %v665 = vpop.permute.xlu0 %664
        %666 = vrot.lane.b32.xlu0 %v271, 92
        %v667 = vpop.permute.xlu0 %666
        %668 = vrot.lane.b32.xlu0 %v342, 92
        %v669 = vpop.permute.xlu0 %668
        %v670 = vsel %vm491, %v663, %v665
        %v671 = vsel %vm491, %v665, %v667
        %v672 = vsel %vm491, %v667, %v669
        %676 = vrot.lane.b32.xlu0 %v269, 91
        %v677 = vpop.permute.xlu0 %676
        %678 = vrot.lane.b32.xlu0 %v270, 91
        %v679 = vpop.permute.xlu0 %678
        %680 = vrot.lane.b32.xlu0 %v271, 91
        %v681 = vpop.permute.xlu0 %680
        %682 = vrot.lane.b32.xlu0 %v342, 91
        %v683 = vpop.permute.xlu0 %682
        %v684 = vsel %vm526, %v677, %v679
        %v685 = vsel %vm526, %v679, %v681
        %v686 = vsel %vm526, %v681, %v683
        %690 = vrot.lane.b32.xlu0 %v269, 90
        %v691 = vpop.permute.xlu0 %690
        %692 = vrot.lane.b32.xlu0 %v270, 90
        %v693 = vpop.permute.xlu0 %692
        %694 = vrot.lane.b32.xlu0 %v271, 90
        %v695 = vpop.permute.xlu0 %694
        %696 = vrot.lane.b32.xlu0 %v342, 90
        %v697 = vpop.permute.xlu0 %696
        %v698 = vsel %vm561, %v691, %v693
        %v699 = vsel %vm561, %v693, %v695
        %v700 = vsel %vm561, %v695, %v697
        %v704 = vpack.c.bf16 %v600, %v269
        %v705 = vpack.c.bf16 %v601, %v270
        %v706 = vpack.c.bf16 %v602, %v271
        %v707 = vpack.c.bf16 %v628, %v614
        %v708 = vpack.c.bf16 %v629, %v615
        %v709 = vpack.c.bf16 %v630, %v616
        %v710 = vpack.c.bf16 %v656, %v642
        %v711 = vpack.c.bf16 %v657, %v643
        %v712 = vpack.c.bf16 %v658, %v644
        %v713 = vpack.c.bf16 %v684, %v670
        %v714 = vpack.c.bf16 %v685, %v671
        %v715 = vpack.c.bf16 %v686, %v672
        %v716 = vpack.c.bf16 %v698, %v698
        %v717 = vpack.c.bf16 %v699, %v699
        %v718 = vpack.c.bf16 %v700, %v700
        %v719 = vld [vmem:[%s4] sm:$0xf]
        %vm720 = vcmask 588800
        %v722 = vsel %vm720, %v719, 0
        %vm724 = vcmask 1043456
        %v726 = vsel %vm724, %v716, 0
        %v729 = vsel %vm724, %v717, 0
        %v732 = vsel %vm724, %v718, 0
        %734 = vmatprep.subr.bf16.mxu0 %v705
        %735 = vmatpush1.bf16.msra.mxu0 %v704
        %736 = vmatprep.subr.bf16.mxu0 %v708
        %737 = vmatpush1.bf16.msra.mxu0 %v707
        %738 = vmatprep.subr.bf16.mxu0 %v711
        %739 = vmatpush1.bf16.msra.mxu0 %v710
        %740 = vmatprep.subr.bf16.mxu0 %v714
        %741 = vmatpush1.bf16.msra.mxu0 %v713
        %742 = vmatprep.subr.bf16.mxu0 %v729
        %743 = vmatpush1.bf16.msra.mxu0 %v726
        %744 = vmatprep.subr.bf16.mxu0 0
        %745 = vmatpush1.bf16.msra.mxu0 0
        %746 = vmatprep.subr.bf16.mxu0 0
        %747 = vmatpush1.bf16.msra.mxu0 0
        %748 = vmatprep.subr.bf16.mxu0 0
        %749 = vmatpush1.bf16.msra.mxu0 0
        %750 = vmatprep.subr.bf16.mxu0 0
        %751 = vmatpush1.bf16.msra.mxu0 0
        %752 = vmatprep.subr.bf16.mxu0 0
        %753 = vmatpush1.bf16.msra.mxu0 0
        %754 = vmatprep.subr.bf16.mxu0 0
        %755 = vmatpush1.bf16.msra.mxu0 0
        %756 = vmatprep.subr.bf16.mxu0 0
        %757 = vmatpush1.bf16.msra.mxu0 0
        %758 = vmatprep.subr.bf16.mxu0 0
        %759 = vmatpush1.bf16.msra.mxu0 0
        %760 = vmatprep.subr.bf16.mxu0 0
        %761 = vmatpush1.bf16.msra.mxu0 0
        %762 = vmatprep.subr.bf16.mxu0 0
        %763 = vmatpush1.bf16.msra.mxu0 0
        %764 = vmatprep.subr.bf16.mxu0 0
        %765 = vmatpush1.bf16.msra.mxu0 0
        %766 = vmatprep.mubr.bf16.mxu0 0
        %767 = vmatmul.mubr.bf16.gmra.mrb[0].mxu0 %v722
        %v768 = vpop.f32.mrb[0].mxu0
        %v769 = vadd.f32 0.0, %v768
        %v770 = vpop.f32.mrb[0].mxu0
        %v771 = vadd.f32 0.0, %v770
        %v772 = vpop.f32.mrb[0].mxu0
        %v773 = vpop.f32.mrb[0].mxu0
        %774 = vdwg.mxu0
        %775 = vmatprep.subr.bf16.mxu0 0
        %776 = vmatpush1.bf16.msra.mxu0 %v706
        %777 = vmatprep.subr.bf16.mxu0 0
        %778 = vmatpush1.bf16.msra.mxu0 %v709
        %779 = vmatprep.subr.bf16.mxu0 0
        %780 = vmatpush1.bf16.msra.mxu0 %v712
        %781 = vmatprep.subr.bf16.mxu0 0
        %782 = vmatpush1.bf16.msra.mxu0 %v715
        %783 = vmatprep.subr.bf16.mxu0 0
        %784 = vmatpush1.bf16.msra.mxu0 %v732
        %785 = vmatprep.subr.bf16.mxu0 0
        %786 = vmatpush1.bf16.msra.mxu0 0
        %787 = vmatprep.subr.bf16.mxu0 0
        %788 = vmatpush1.bf16.msra.mxu0 0
        %789 = vmatprep.subr.bf16.mxu0 0
        %790 = vmatpush1.bf16.msra.mxu0 0
        %791 = vmatprep.subr.bf16.mxu0 0
        %792 = vmatpush1.bf16.msra.mxu0 0
        %793 = vmatprep.subr.bf16.mxu0 0
        %794 = vmatpush1.bf16.msra.mxu0 0
        %795 = vmatprep.subr.bf16.mxu0 0
        %796 = vmatpush1.bf16.msra.mxu0 0
        %797 = vmatprep.subr.bf16.mxu0 0
        %798 = vmatpush1.bf16.msra.mxu0 0
        %799 = vmatprep.subr.bf16.mxu0 0
        %800 = vmatpush1.bf16.msra.mxu0 0
        %801 = vmatprep.subr.bf16.mxu0 0
        %802 = vmatpush1.bf16.msra.mxu0 0
        %803 = vmatprep.subr.bf16.mxu0 0
        %804 = vmatpush1.bf16.msra.mxu0 0
        %805 = vmatprep.subr.bf16.mxu0 0
        %806 = vmatpush1.bf16.msra.mxu0 0
        %807 = vmatprep.mubr.bf16.mxu0 0
        %808 = vmatmul.mubr.bf16.gmra.mrb[0].mxu0 %v722
        %v809 = vpop.f32.mrb[0].mxu0
        %v810 = vadd.f32 0.0, %v809
        %v811 = vpop.f32.mrb[0].mxu0
        %v812 = vpop.f32.mrb[0].mxu0
        %v813 = vpop.f32.mrb[0].mxu0
        %814 = vdwg.mxu0
        %s815 = sld [smem:[#allocation2 + $0x1]]
        %v816 = vstv %s815
        %v817 = vmul.f32 %v816, %v240
        %v818 = vmul.f32 %v816, %v241
        %v819 = vmul.f32 %v816, %v242
        %v820 = vmul.f32 %v816, %v272
        %v821 = vld [vmem:[%s3] sm:$0x7]
        %v823 = vlaneseq
        %v824 = vshrl.u32 %v823, 7
        %v825 = vsub.s32 0, %v824
        %v826 = vrot.slane %v821, %v825
        %v827 = vlaneseq
        %v828 = vshrl.u32 %v827, 7
        %v829 = vsub.s32 1, %v828
        %v830 = vrot.slane %v821, %v829
        %v831 = vlaneseq
        %v832 = vshrl.u32 %v831, 7
        %v833 = vsub.s32 2, %v832
        %v834 = vrot.slane %v821, %v833
        %v838 = vmul.f32 %v568, %v826
        %v839 = vmul.f32 %v569, %v830
        %v840 = vmul.f32 %v570, %v834
        %844 = vrot.lane.b32.xlu0 %v838, 19
        %v845 = vpop.permute.xlu0 %844
        %846 = vrot.lane.b32.xlu0 %v839, 19
        %v847 = vpop.permute.xlu0 %846
        %848 = vrot.lane.b32.xlu0 %v840, 19
        %v849 = vpop.permute.xlu0 %848
        %vm850 = vcmask 154624
        %v851 = vsel %vm850, %v845, %v847
        %v852 = vsel %vm850, %v847, %v849
        %v857 = vadd.f32 %v817, %v845
        %v858 = vadd.f32 %v818, %v851
        %v859 = vadd.f32 %v819, %v852
        %v860 = vadd.f32 %v820, %v849
        %s861 = sld [smem:[#allocation2 + $0x3]]
        %v862 = vstv %s861
        %v863 = vmul.f32 %v862, %v585
        %v864 = vmul.f32 %v862, %v586
        %v865 = vmul.f32 %v862, %v587
        %869 = vrot.lane.b32.xlu0 %v863, 19
        %v870 = vpop.permute.xlu0 %869
        %871 = vrot.lane.b32.xlu0 %v864, 19
        %v872 = vpop.permute.xlu0 %871
        %873 = vrot.lane.b32.xlu0 %v865, 19
        %v874 = vpop.permute.xlu0 %873
        %v875 = vsel %vm850, %v870, %v872
        %v876 = vsel %vm850, %v872, %v874
        %v881 = vadd.f32 %v857, %v870
        %v882 = vadd.f32 %v858, %v875
        %v883 = vadd.f32 %v859, %v876
        %v884 = vadd.f32 %v860, %v874
        %888 = vrot.lane.b32.xlu0 %v769, 19
        %v889 = vpop.permute.xlu0 %888
        %890 = vrot.lane.b32.xlu0 %v771, 19
        %v891 = vpop.permute.xlu0 %890
        %892 = vrot.lane.b32.xlu0 %v810, 19
        %v893 = vpop.permute.xlu0 %892
        %v894 = vsel %vm850, %v889, %v891
        %v895 = vsel %vm850, %v891, %v893
        %v900 = vadd.f32 %v881, %v889
        %v901 = vadd.f32 %v882, %v894
        %v902 = vadd.f32 %v883, %v895
        %v903 = vadd.f32 %v884, %v893
        %908 = vrot.lane.b32.xlu0 %v900, 109
        %v909 = vpop.permute.xlu0 %908
        %910 = vrot.lane.b32.xlu0 %v901, 109
        %v911 = vpop.permute.xlu0 %910
        %912 = vrot.lane.b32.xlu0 %v902, 109
        %v913 = vpop.permute.xlu0 %912
        %914 = vrot.lane.b32.xlu0 %v903, 109
        %v915 = vpop.permute.xlu0 %914
        %v916 = vsel %vm421, %v909, %v911
        %v917 = vsel %vm421, %v911, %v913
        %v918 = vsel %vm421, %v913, %v915
        %922 = vst [vmem:[%s238] sm:$0xff] %v916
        %923 = vst [vmem:[%s238 + $0x8] sm:$0xff] %v917
        %924 = vst [vmem:[%s238 + $0x10] sm:$0xff] %v918
        %p925 = scmp.lt.s32.totalorder %s17, 1
        %s926 = scalar_select %p925, %s17, 1
        %s927 = smul.addr %s926, 3
        %s928 = smul.addr %s927, 8
        %s929 = scalar_lea.vmem %s5, %s928
        // Predicated region
        $region45: #{mixed_op.1} parent=39 // pred_check
          %p930 = pneg %p145
        $region46: #{mixed_op.1} parent=39 // pred_check_branch
          %932 = sbr.rel (%p930) target = $region48
        $region47: #{mixed_op.1} parent=39 // pred_region
          _
        $region48: #{mixed_op.1} parent=39 // pred_fallthru
          _
      $region40: #{mixed_op.1} parent=5 // pred_fallthru
        _
      %p933 = scmp.le.s32.totalorder 2, %s12
      // Predicated region
      $region49: #{mixed_op.1} parent=5 // pred_check
        %p934 = pneg %p933
      $region50: #{mixed_op.1} parent=5 // pred_check_branch
        %936 = sbr.rel (%p934) target = $region52
      $region51: #{mixed_op.1} parent=5 // pred_region
        %s937 = ssub.s32 %s12, 2
        // Predicated region
        $region53: #{mixed_op.1} parent=51 // pred_check
          %p938 = pneg %p151
        $region54: #{mixed_op.1} parent=51 // pred_check_branch
          %940 = sbr.rel (%p938) target = $region56
        $region55: #{mixed_op.1} parent=51 // pred_region
          %p941 = scmp.lt.s32.totalorder %s18, 1
          %s942 = scalar_select %p941, %s18, 1
          %s943 = smul.addr %s942, 3
          %s944 = smul.addr %s943, 8
          %s945 = scalar_lea.vmem %s5, %s944
        $region56: #{mixed_op.1} parent=51 // pred_fallthru
          _
      $region52: #{mixed_op.1} parent=5 // pred_fallthru
        _
    $region6: #{mixed_op.1} parent=1 // loop_footer
      %s16 = sadd.s32 1, %s12
    $region7: #{mixed_op.1} parent=1 // loop_footer_branch
      %11 = sbr.rel target = $region3
    $region8: #{mixed_op.1} parent=1 // loop_exit
      _
    %946 = vsyncpa [#allocation3], 1
    %s947 = scalar_lea.sflag [#allocation3], 1
    %948 = vsyncpa %s947, 1

</llo_original>
